<compile_context>
chip_gen: v6e
topology: v6e:2x2x1
jax: 0.10.0
libtpu: 0.0.40
codegen_flags: <defaults>
</compile_context>

<pallas_src>
import jax
import jax.numpy as jnp
from jax.experimental import pallas as pl
from jax.experimental.pallas import tpu as pltpu

NUM_FEATURES = 8
NUM_CLASSES = 20
BN_EPS = 1e-5
HIDDEN = (64, 32, 16)

LANES = 128
# Row offsets of each folded weight matrix inside the packed (128, 128) slab:
#   W1: rows   0:  8  (8 x 64)
#   W2: rows   8: 72  (64 x 32)
#   W3: rows  72:104  (32 x 16)
#   W4: rows 104:120  (16 x 128, real classes in lanes 0:20, rest zero)
_W_ROWS = (0, 8, 72, 104, 120)
_W_COLS = (64, 32, 16, LANES)
_HIGH = jax.lax.Precision.HIGHEST


def _mlp_kernel(x_ref, wpack_ref, bpack_ref, labels_ref, flag_ref,
                logits_ref, loss_ref):
    B = x_ref.shape[0]

    def layer(h, li, relu=True):
        r0, r1 = _W_ROWS[li], _W_ROWS[li + 1]
        width = _W_COLS[li]
        w = wpack_ref[r0:r1, 0:width]          # static slice of the weight slab
        b = bpack_ref[li:li + 1, 0:width]
        h = jnp.dot(h, w, preferred_element_type=jnp.float32) + b
        return jnp.maximum(h, 0.0) if relu else h

    h = layer(x_ref[...], 0)
    h = layer(h, 1)
    h = layer(h, 2)
    # Final layer emits a lane-dense (B, 128) block; lanes >= NUM_CLASSES are
    # exactly zero because the padded weight/bias columns are zero.
    logits = layer(h, 3, relu=False)
    logits_ref[...] = logits

    loss_ref[...] = jnp.zeros_like(loss_ref)

    # Cross-entropy only when labels are supplied (skips EUP/XLU work for the
    # common inference case).
    @pl.when(flag_ref[0] > 0)
    def _():
        lg = logits[:, :NUM_CLASSES]                                  # (B, 20)
        m = jnp.max(lg, axis=-1, keepdims=True)
        lse = jnp.log(jnp.sum(jnp.exp(lg - m), axis=-1, keepdims=True)) + m
        cls = jax.lax.broadcasted_iota(jnp.int32, (B, NUM_CLASSES), 1)
        picked = jnp.sum(jnp.where(cls == labels_ref[...], lg, 0.0),
                         axis=-1, keepdims=True)
        loss_ref[...] = (jnp.sum(lse - picked) * (1.0 / B)).reshape(1, 1)


def make_params(key):
    """PyTorch-shaped parameters for ComplexFingerprintModel (with non-trivial
    BN running stats so the folding path is genuinely exercised)."""
    dims = (NUM_FEATURES,) + HIDDEN + (NUM_CLASSES,)
    params = []
    keys = jax.random.split(key, 16)
    ki = 0
    for li in range(4):
        fan_in, fan_out = dims[li], dims[li + 1]
        bound = fan_in ** -0.5
        w = jax.random.uniform(keys[ki], (fan_in, fan_out), jnp.float32, -bound, bound)
        b = jax.random.uniform(keys[ki + 1], (1, fan_out), jnp.float32, -bound, bound)
        ki += 2
        params.extend([w, b])
        if li < 3:  # BatchNorm1d after the first three Linear+ReLU blocks
            c = fan_out
            gamma = jax.random.uniform(keys[ki], (1, c), jnp.float32, 0.5, 1.5)
            beta = 0.1 * jax.random.normal(keys[ki + 1], (1, c), jnp.float32)
            running_mean = 0.1 * jax.random.normal(jax.random.fold_in(keys[ki], 7),
                                                   (1, c), jnp.float32)
            running_var = jax.random.uniform(jax.random.fold_in(keys[ki + 1], 7),
                                             (1, c), jnp.float32, 0.5, 1.5)
            ki += 2
            params.extend([gamma, beta, running_mean, running_var])
    return params


def fold_and_pack_params(params):
    """Fold eval-mode BN into the following Linear layers and pack everything
    into two lane-dense slabs.  Done ONCE per parameter set, outside the hot path."""
    (w1, b1, g1, be1, rm1, rv1,
     w2, b2, g2, be2, rm2, rv2,
     w3, b3, g3, be3, rm3, rv3,
     w4, b4) = params

    def fold_into_next(g, be, rm, rv, w_next, b_next):
        s = g * jax.lax.rsqrt(rv + BN_EPS)          # (1, c)
        t = be - rm * s                             # (1, c)
        w_f = w_next * s.reshape(-1, 1)             # (c, n)
        b_f = jnp.dot(t, w_next, precision=_HIGH) + b_next
        return w_f, b_f

    w2f, b2f = fold_into_next(g1, be1, rm1, rv1, w2, b2)
    w3f, b3f = fold_into_next(g2, be2, rm2, rv2, w3, b3)
    w4f, b4f = fold_into_next(g3, be3, rm3, rv3, w4, b4)

    wpack = jnp.zeros((LANES, LANES), jnp.float32)
    bpack = jnp.zeros((8, LANES), jnp.float32)
    for li, (w, b) in enumerate(((w1, b1), (w2f, b2f), (w3f, b3f), (w4f, b4f))):
        r0 = _W_ROWS[li]
        wpack = wpack.at[r0:r0 + w.shape[0], :w.shape[1]].set(w)
        bpack = bpack.at[li, :b.shape[1]].set(b[0])
    return wpack, bpack


def hf_wrapper_forward(pixel_values, labels, wpack, bpack):
    B = pixel_values.shape[0]
    if labels is None:
        labels2d = jnp.zeros((B, 1), jnp.int32)
        flag = jnp.zeros((1,), jnp.int32)
    else:
        labels2d = labels.reshape(B, 1).astype(jnp.int32)
        flag = jnp.ones((1,), jnp.int32)

    vmem = pl.BlockSpec(memory_space=pltpu.MemorySpace.VMEM)
    smem = pl.BlockSpec(memory_space=pltpu.MemorySpace.SMEM)

    logits_pad, loss = pl.pallas_call(
        _mlp_kernel,
        out_shape=(jax.ShapeDtypeStruct((B, LANES), jnp.float32),
                   jax.ShapeDtypeStruct((1, 1), jnp.float32)),
        in_specs=[vmem, vmem, vmem, vmem, smem],
        out_specs=(vmem, vmem),
    )(pixel_values.astype(jnp.float32), wpack, bpack, labels2d, flag)

    logits = logits_pad[:, :NUM_CLASSES]
    return {'loss': None if labels is None else loss[0, 0], 'logits': logits}


def _ref_forward(x, labels, params):
    """Pure-JAX reference of the original (unfolded) forward, for a sanity check."""
    (w1, b1, g1, be1, rm1, rv1,
     w2, b2, g2, be2, rm2, rv2,
     w3, b3, g3, be3, rm3, rv3,
     w4, b4) = params

    def block(h, w, b, g, be, rm, rv):
        h = jnp.maximum(jnp.dot(h, w, precision=_HIGH) + b, 0.0)
        return (h - rm) * jax.lax.rsqrt(rv + BN_EPS) * g + be

    h = block(x, w1, b1, g1, be1, rm1, rv1)
    h = block(h, w2, b2, g2, be2, rm2, rv2)
    h = block(h, w3, b3, g3, be3, rm3, rv3)
    logits = jnp.dot(h, w4, precision=_HIGH) + b4
    loss = None
    if labels is not None:
        logp = jax.nn.log_softmax(logits, axis=-1)
        loss = -jnp.mean(jnp.take_along_axis(logp, labels[:, None], axis=-1))
    return loss, logits


if __name__ == "__main__":
    key = jax.random.PRNGKey(0)
    kx, kl, kp = jax.random.split(key, 3)

    batch = 8
    pixel_values = jax.random.normal(kx, (batch, NUM_FEATURES), jnp.float32)
    labels = jax.random.randint(kl, (batch,), 0, NUM_CLASSES, jnp.int32)

    raw_params = make_params(kp)
    wpack, bpack = fold_and_pack_params(raw_params)

    # With labels: forward + cross-entropy.
    out = hf_wrapper_forward(pixel_values, labels, wpack, bpack)
    logits = jax.block_until_ready(out['logits'])
    loss = jax.block_until_ready(out['loss'])

    # Without labels: loss branch skipped in-kernel via pl.when on the SMEM flag.
    out_nl = hf_wrapper_forward(pixel_values, None, wpack, bpack)
    logits_nl = jax.block_until_ready(out_nl['logits'])
    assert out_nl['loss'] is None

    ref_loss, ref_logits = _ref_forward(pixel_values, labels, raw_params)
    assert jnp.allclose(logits, ref_logits, atol=1e-4, rtol=1e-4), \
        float(jnp.max(jnp.abs(logits - ref_logits)))
    assert jnp.allclose(logits_nl, ref_logits, atol=1e-4, rtol=1e-4)
    assert jnp.allclose(loss, ref_loss, atol=1e-4, rtol=1e-4), \
        (float(loss), float(ref_loss))

    print("KERNEL_OK")
</pallas_src>

<mosaic_0001>
module attributes {stable_mosaic.version = 11 : i64} {
  func.func @_mlp_kernel(%arg0: memref<8x8xf32, #tpu.memory_space<vmem>>, %arg1: memref<128x128xf32, #tpu.memory_space<vmem>>, %arg2: memref<8x128xf32, #tpu.memory_space<vmem>>, %arg3: memref<8x1xi32, #tpu.memory_space<vmem>>, %arg4: memref<1xi32, #tpu.memory_space<smem>>, %arg5: memref<8x128xf32, #tpu.memory_space<vmem>>, %arg6: memref<1x1xf32, #tpu.memory_space<vmem>>) attributes {dimension_semantics = [], scalar_prefetch = 0 : i64, scratch_operands = 0 : i64, tpu.core_type = #tpu.core_type<tc>} {
    %c0 = arith.constant 0 : index
    %c0_0 = arith.constant 0 : index
    %0 = vector.load %arg0[%c0, %c0_0] : memref<8x8xf32, #tpu.memory_space<vmem>>, vector<8x8xf32>
    %c0_1 = arith.constant 0 : index
    %c0_2 = arith.constant 0 : index
    %1 = vector.load %arg1[%c0_1, %c0_2] : memref<128x128xf32, #tpu.memory_space<vmem>>, vector<8x64xf32>
    %c0_3 = arith.constant 0 : index
    %c0_4 = arith.constant 0 : index
    %2 = vector.load %arg2[%c0_3, %c0_4] : memref<8x128xf32, #tpu.memory_space<vmem>>, vector<1x64xf32>
    %cst = arith.constant dense<0.000000e+00> : vector<8x64xf32>
    %3 = tpu.matmul %0, %1, %cst {dimension_numbers = #tpu.dot_dimension_numbers<[1], [0], [0], [1], [0, 0, 1, 1], [], []>} : vector<8x8xf32>, vector<8x64xf32>, vector<8x64xf32> -> vector<8x64xf32>
    %4 = vector.broadcast %2 : vector<1x64xf32> to vector<8x64xf32>
    %5 = arith.addf %3, %4 : vector<8x64xf32>
    %cst_5 = arith.constant 0.000000e+00 : f32
    %6 = vector.broadcast %cst_5 : f32 to vector<8x64xf32>
    %7 = arith.maximumf %5, %6 : vector<8x64xf32>
    %c8 = arith.constant 8 : index
    %c0_6 = arith.constant 0 : index
    %8 = vector.load %arg1[%c8, %c0_6] : memref<128x128xf32, #tpu.memory_space<vmem>>, vector<64x32xf32>
    %c1 = arith.constant 1 : index
    %c0_7 = arith.constant 0 : index
    %9 = vector.load %arg2[%c1, %c0_7] : memref<8x128xf32, #tpu.memory_space<vmem>>, vector<1x32xf32>
    %cst_8 = arith.constant dense<0.000000e+00> : vector<8x32xf32>
    %10 = tpu.matmul %7, %8, %cst_8 {dimension_numbers = #tpu.dot_dimension_numbers<[1], [0], [0], [1], [0, 0, 1, 1], [], []>} : vector<8x64xf32>, vector<64x32xf32>, vector<8x32xf32> -> vector<8x32xf32>
    %11 = vector.broadcast %9 : vector<1x32xf32> to vector<8x32xf32>
    %12 = arith.addf %10, %11 : vector<8x32xf32>
    %cst_9 = arith.constant 0.000000e+00 : f32
    %13 = vector.broadcast %cst_9 : f32 to vector<8x32xf32>
    %14 = arith.maximumf %12, %13 : vector<8x32xf32>
    %c72 = arith.constant 72 : index
    %c0_10 = arith.constant 0 : index
    %15 = vector.load %arg1[%c72, %c0_10] : memref<128x128xf32, #tpu.memory_space<vmem>>, vector<32x16xf32>
    %c2 = arith.constant 2 : index
    %c0_11 = arith.constant 0 : index
    %16 = vector.load %arg2[%c2, %c0_11] : memref<8x128xf32, #tpu.memory_space<vmem>>, vector<1x16xf32>
    %cst_12 = arith.constant dense<0.000000e+00> : vector<8x16xf32>
    %17 = tpu.matmul %14, %15, %cst_12 {dimension_numbers = #tpu.dot_dimension_numbers<[1], [0], [0], [1], [0, 0, 1, 1], [], []>} : vector<8x32xf32>, vector<32x16xf32>, vector<8x16xf32> -> vector<8x16xf32>
    %18 = vector.broadcast %16 : vector<1x16xf32> to vector<8x16xf32>
    %19 = arith.addf %17, %18 : vector<8x16xf32>
    %cst_13 = arith.constant 0.000000e+00 : f32
    %20 = vector.broadcast %cst_13 : f32 to vector<8x16xf32>
    %21 = arith.maximumf %19, %20 : vector<8x16xf32>
    %c104 = arith.constant 104 : index
    %c0_14 = arith.constant 0 : index
    %22 = vector.load %arg1[%c104, %c0_14] : memref<128x128xf32, #tpu.memory_space<vmem>>, vector<16x128xf32>
    %c3 = arith.constant 3 : index
    %c0_15 = arith.constant 0 : index
    %23 = vector.load %arg2[%c3, %c0_15] : memref<8x128xf32, #tpu.memory_space<vmem>>, vector<1x128xf32>
    %cst_16 = arith.constant dense<0.000000e+00> : vector<8x128xf32>
    %24 = tpu.matmul %21, %22, %cst_16 {dimension_numbers = #tpu.dot_dimension_numbers<[1], [0], [0], [1], [0, 0, 1, 1], [], []>} : vector<8x16xf32>, vector<16x128xf32>, vector<8x128xf32> -> vector<8x128xf32>
    %25 = vector.broadcast %23 : vector<1x128xf32> to vector<8x128xf32>
    %26 = arith.addf %24, %25 : vector<8x128xf32>
    %c0_17 = arith.constant 0 : index
    %c0_18 = arith.constant 0 : index
    %27 = vector.load %arg5[%c0_17, %c0_18] : memref<8x128xf32, #tpu.memory_space<vmem>>, vector<8x128xf32>
    tpu.vector_store %arg5[%c0_17, %c0_18], %26 {strides = array<i32>} : memref<8x128xf32, #tpu.memory_space<vmem>>, vector<8x128xf32>,
    %cst_19 = arith.constant 0.000000e+00 : f32
    %28 = vector.broadcast %cst_19 : f32 to vector<1x1xf32>
    %c0_20 = arith.constant 0 : index
    %c0_21 = arith.constant 0 : index
    %29 = vector.load %arg6[%c0_20, %c0_21] : memref<1x1xf32, #tpu.memory_space<vmem>>, vector<1x1xf32>
    tpu.vector_store %arg6[%c0_20, %c0_21], %28 {strides = array<i32>} : memref<1x1xf32, #tpu.memory_space<vmem>>, vector<1x1xf32>,
    %c0_22 = arith.constant 0 : index
    %30 = memref.load %arg4[%c0_22] : memref<1xi32, #tpu.memory_space<smem>>
    %c0_i32 = arith.constant 0 : i32
    %31 = arith.cmpi sgt, %30, %c0_i32 : i32
    %32 = arith.extui %31 : i1 to i32
    %c0_i32_23 = arith.constant 0 : i32
    %33 = arith.cmpi ne, %32, %c0_i32_23 : i32
    scf.if %33 {
      %34 = vector.extract_strided_slice %26 {offsets = [0, 0], sizes = [8, 20], strides = [1, 1]} : vector<8x128xf32> to vector<8x20xf32>
      %cst_24 = arith.constant dense<0xFF800000> : vector<8xf32>
      %35 = vector.multi_reduction <maximumf>, %34, %cst_24 [1] : vector<8x20xf32> to vector<8xf32>
      %36 = vector.shape_cast %35 : vector<8xf32> to vector<8x1xf32>
      %37 = vector.broadcast %36 : vector<8x1xf32> to vector<8x20xf32>
      %38 = arith.subf %34, %37 : vector<8x20xf32>
      %39 = math.exp %38 : vector<8x20xf32>
      %cst_25 = arith.constant dense<0.000000e+00> : vector<8xf32>
      %40 = vector.multi_reduction <add>, %39, %cst_25 [1] : vector<8x20xf32> to vector<8xf32>
      %41 = vector.shape_cast %40 : vector<8xf32> to vector<8x1xf32>
      %42 = math.log %41 : vector<8x1xf32>
      %43 = arith.addf %42, %36 : vector<8x1xf32>
      %44 = tpu.iota {dimensions = array<i32: 1>} : vector<8x20xi32>
      %c0_26 = arith.constant 0 : index
      %c0_27 = arith.constant 0 : index
      %45 = vector.load %arg3[%c0_26, %c0_27] : memref<8x1xi32, #tpu.memory_space<vmem>>, vector<8x1xi32>
      %46 = vector.broadcast %45 : vector<8x1xi32> to vector<8x20xi32>
      %47 = arith.cmpi eq, %44, %46 : vector<8x20xi32>
      %cst_28 = arith.constant 0.000000e+00 : f32
      %48 = vector.broadcast %cst_28 : f32 to vector<8x20xf32>
      %49 = arith.select %47, %34, %48 : vector<8x20xi1>, vector<8x20xf32>
      %cst_29 = arith.constant dense<0.000000e+00> : vector<8xf32>
      %50 = vector.multi_reduction <add>, %49, %cst_29 [1] : vector<8x20xf32> to vector<8xf32>
      %51 = vector.shape_cast %50 : vector<8xf32> to vector<8x1xf32>
      %52 = arith.subf %43, %51 : vector<8x1xf32>
      %53 = vector.shape_cast %52 : vector<8x1xf32> to vector<1x8x1xf32>
      %cst_30 = arith.constant dense<0.000000e+00> : vector<1xf32>
      %54 = vector.multi_reduction <add>, %53, %cst_30 [1, 2] : vector<1x8x1xf32> to vector<1xf32>
      %55 = vector.shape_cast %54 : vector<1xf32> to vector<1x1x1xf32>
      %56 = vector.extract %55[0, 0, 0] : f32 from vector<1x1x1xf32>
      %cst_31 = arith.constant 1.250000e-01 : f32
      %57 = arith.mulf %56, %cst_31 : f32
      %58 = vector.broadcast %57 : f32 to vector<1x1xf32>
      %c0_32 = arith.constant 0 : index
      %c0_33 = arith.constant 0 : index
      %59 = vector.load %arg6[%c0_32, %c0_33] : memref<1x1xf32, #tpu.memory_space<vmem>>, vector<1x1xf32>
      tpu.vector_store %arg6[%c0_32, %c0_33], %58 {strides = array<i32>} : memref<1x1xf32, #tpu.memory_space<vmem>>, vector<1x1xf32>,
    } else {
    }
    return
  }
}

</mosaic_0001>

<llo_original>
// kernel: tpu_custom_call.1
$region0: #{tpu_custom_call.1}
  #allocation0 [shape = 'u32[]', space=smem, size = 0x4, offset = 0x4, fixed_abs, tag = 'smem constant byte address 0x4 - core index']
  #allocation1 [shape = 'u32[144,128]{1,0:T(1,128)}', space=vmem, size = 0x12000, scoped, tag = 'internal scratch']
  #allocation2 [shape = 's32[1]{0:T(128)S(6)}', space=smem, size = 0x200, scoped, tag = 'scoped memory for tpu_custom_call.1']
  %s0 = inlined_call_operand.vmem [shape: f32[8,8], index: 0, kind: input, shape index: {}]
  %s1 = inlined_call_operand.hbm [shape: f32[128,128], index: 1, kind: input, shape index: {}]
  %s2 = inlined_call_operand.hbm [shape: f32[8,128], index: 2, kind: input, shape index: {}]
  %s3 = inlined_call_operand.vmem [shape: s32[8,1], index: 3, kind: input, shape index: {}]
  %s4 = inlined_call_operand.<no memory space> [shape: s32[1], index: 4, kind: input, shape index: {}]
  %s5 = inlined_call_operand.hbm [shape: f32[8,128], index: 5, kind: output, shape index: {0}]
  %s6 = inlined_call_operand.hbm [shape: f32[1,1], index: 6, kind: output, shape index: {1}]
  %7 = xla_tuple %s5, %s6
  %s8 = sld [smem:[#allocation0]]
  $region50: #{tpu_custom_call.1} parent=0
    _
  %s10 = ssub.s32 1, %s8
  %s11 = scalar_select 0, %s10, %s8
  %12 = sst [smem:[#allocation2]] %s4
  $region1: #{tpu_custom_call.1} parent=0
    #allocation3 [shape = 'u8[65536]{0}', space=vmem, size = 0x10000, scoped, tag = 'input window, operand 1, single buffered']
    #allocation4 [shape = 's32[1]{0}', space=sflag, size = 0x4, scoped, tag = 'scoped memory for tpu_custom_call.1']
    #allocation5 [shape = 's32[1]{0}', space=sflag, size = 0x4, scoped, tag = 'scoped memory for tpu_custom_call.1']
    #allocation6 [shape = 'u8[4096]{0}', space=vmem, size = 0x1000, scoped, tag = 'input window, operand 2, single buffered']
    #allocation7 [shape = 's32[1]{0}', space=sflag, size = 0x4, scoped, tag = 'scoped memory for tpu_custom_call.1']
    #allocation8 [shape = 'u8[4096]{0}', space=vmem, size = 0x1000, scoped, tag = 'output window, operand 0, single buffered']
    #allocation9 [shape = 'u8[512]{0}', space=vmem, size = 0x400, scoped, tag = 'output window, operand 1, single buffered']
    #allocation10 [shape = 's32[1]{0}', space=sflag, size = 0x4, scoped, tag = 'scoped memory for tpu_custom_call.1']
    %13 = vsyncpa [#allocation4], 0
    %14 = vsyncpa [#allocation7], 0
    %15 = vsyncpa [#allocation5], 0
    %16 = vsyncpa [#allocation10], 0
    // Predicated region
    $region2: #{tpu_custom_call.1} parent=1 // pred_check
      _
    $region3: #{tpu_custom_call.1} parent=1 // pred_check_branch
      %18 = sbr.rel (0) target = $region5
    $region4: #{tpu_custom_call.1} parent=1 // pred_region
      _
    $region5: #{tpu_custom_call.1} parent=1 // pred_fallthru
      _
    // Predicated region
    $region6: #{tpu_custom_call.1} parent=1 // pred_check
      _
    $region7: #{tpu_custom_call.1} parent=1 // pred_check_branch
      %20 = sbr.rel (0) target = $region9
    $region8: #{tpu_custom_call.1} parent=1 // pred_region
      %s22 = ssub.s32 2048, 2048
      %23 = vsyncadd [#allocation4], %s22
      %s24 = sshll.u32 [#allocation3], 4
      %s25 = int_to_ptr.vmem [resolvable:$true] %s24
      %30 = dma.hbm_to_vmem [thread:$0]  %s1, 2048, %s25, [#allocation4], 128, 128, 8
    $region9: #{tpu_custom_call.1} parent=1 // pred_fallthru
      _
    // Predicated region
    $region10: #{tpu_custom_call.1} parent=1 // pred_check
      _
    $region11: #{tpu_custom_call.1} parent=1 // pred_check_branch
      %32 = sbr.rel (0) target = $region13
    $region12: #{tpu_custom_call.1} parent=1 // pred_region
      %s34 = ssub.s32 128, 128
      %35 = vsyncadd [#allocation7], %s34
      %s37 = sshll.u32 [#allocation6], 4
      %s38 = int_to_ptr.vmem [resolvable:$true] %s37
      %40 = dma.hbm_to_vmem [thread:$0]  %s2, 128, %s38, [#allocation7]
    $region13: #{tpu_custom_call.1} parent=1 // pred_fallthru
      _
    // Predicated region
    $region14: #{tpu_custom_call.1} parent=1 // pred_check
      _
    $region15: #{tpu_custom_call.1} parent=1 // pred_check_branch
      %42 = sbr.rel (0) target = $region17
    $region16: #{tpu_custom_call.1} parent=1 // pred_region
      _
    $region17: #{tpu_custom_call.1} parent=1 // pred_fallthru
      _
    // Predicated region
    $region18: #{tpu_custom_call.1} parent=1 // pred_check
      _
    $region19: #{tpu_custom_call.1} parent=1 // pred_check_branch
      %44 = sbr.rel (0) target = $region21
    $region20: #{tpu_custom_call.1} parent=1 // pred_region
      _
    $region21: #{tpu_custom_call.1} parent=1 // pred_fallthru
      _
    // Predicated region
    $region22: #{tpu_custom_call.1} parent=1 // pred_check
      _
    $region23: #{tpu_custom_call.1} parent=1 // pred_check_branch
      %46 = sbr.rel (0) target = $region25
    $region24: #{tpu_custom_call.1} parent=1 // pred_region
      %47 = dma.done [#allocation4], 2048
    $region25: #{tpu_custom_call.1} parent=1 // pred_fallthru
      _
    // Predicated region
    $region26: #{tpu_custom_call.1} parent=1 // pred_check
      _
    $region27: #{tpu_custom_call.1} parent=1 // pred_check_branch
      %49 = sbr.rel (0) target = $region29
    $region28: #{tpu_custom_call.1} parent=1 // pred_region
      %50 = dma.done [#allocation7], 128
    $region29: #{tpu_custom_call.1} parent=1 // pred_fallthru
      _
    %v51 = vld [vmem:[%s0] sm:$0xff]
    %v52 = vld [vmem:[#allocation3] sm:$0xff]
    %v53 = vld [vmem:[#allocation6] sm:$0x1]
    %v54 = vlaneseq
    %v55 = vshrl.u32 %v54, 7
    %v56 = vsub.s32 0, %v55
    %v57 = vrot.slane %v53, %v56
    %vm58 = vcmask 64512
    %v60 = vsel %vm58, %v51, 0
    %62 = vmatprep.subr.mxu0 0.0
    %63 = vmatpush1.msra.mxu0 0.0
    %64 = vmatprep.subr.mxu0 0.0
    %65 = vmatpush1.msra.mxu0 0.0
    %66 = vmatprep.subr.mxu0 0.0
    %67 = vmatpush1.msra.mxu0 0.0
    %68 = vmatprep.subr.mxu0 0.0
    %69 = vmatpush1.msra.mxu0 0.0
    %70 = vmatprep.subr.mxu0 0.0
    %71 = vmatpush1.msra.mxu0 0.0
    %72 = vmatprep.subr.mxu0 0.0
    %73 = vmatpush1.msra.mxu0 0.0
    %74 = vmatprep.subr.mxu0 0.0
    %75 = vmatpush1.msra.mxu0 0.0
    %76 = vmatprep.subr.mxu0 0.0
    %77 = vmatpush1.msra.mxu0 0.0
    %78 = vmatprep.subr.mxu0 0.0
    %79 = vmatpush1.msra.mxu0 0.0
    %80 = vmatprep.subr.mxu0 0.0
    %81 = vmatpush1.msra.mxu0 0.0
    %82 = vmatprep.subr.mxu0 0.0
    %83 = vmatpush1.msra.mxu0 0.0
    %84 = vmatprep.subr.mxu0 0.0
    %85 = vmatpush1.msra.mxu0 0.0
    %86 = vmatprep.subr.mxu0 0.0
    %87 = vmatpush1.msra.mxu0 0.0
    %88 = vmatprep.subr.mxu0 0.0
    %89 = vmatpush1.msra.mxu0 0.0
    %90 = vmatprep.subr.mxu0 0.0
    %91 = vmatpush1.msra.mxu0 0.0
    %92 = vmatprep.subr.mxu0 0.0
    %93 = vmatpush1.msra.mxu0 %v52
    %94 = vmatprep.subr.mxu0 0.0
    %95 = vmatpush2.msra.mxu0 0.0
    %96 = vmatprep.subr.mxu0 0.0
    %97 = vmatpush2.msra.mxu0 0.0
    %98 = vmatprep.subr.mxu0 0.0
    %99 = vmatpush2.msra.mxu0 0.0
    %100 = vmatprep.subr.mxu0 0.0
    %101 = vmatpush2.msra.mxu0 0.0
    %102 = vmatprep.subr.mxu0 0.0
    %103 = vmatpush2.msra.mxu0 0.0
    %104 = vmatprep.subr.mxu0 0.0
    %105 = vmatpush2.msra.mxu0 0.0
    %106 = vmatprep.subr.mxu0 0.0
    %107 = vmatpush2.msra.mxu0 0.0
    %108 = vmatprep.subr.mxu0 0.0
    %109 = vmatpush2.msra.mxu0 0.0
    %110 = vmatprep.subr.mxu0 0.0
    %111 = vmatpush2.msra.mxu0 0.0
    %112 = vmatprep.subr.mxu0 0.0
    %113 = vmatpush2.msra.mxu0 0.0
    %114 = vmatprep.subr.mxu0 0.0
    %115 = vmatpush2.msra.mxu0 0.0
    %116 = vmatprep.subr.mxu0 0.0
    %117 = vmatpush2.msra.mxu0 0.0
    %118 = vmatprep.subr.mxu0 0.0
    %119 = vmatpush2.msra.mxu0 0.0
    %120 = vmatprep.subr.mxu0 0.0
    %121 = vmatpush2.msra.mxu0 0.0
    %122 = vmatprep.subr.mxu0 0.0
    %123 = vmatpush2.msra.mxu0 0.0
    %124 = vmatprep.subr.mxu0 0.0
    %125 = vmatpush2.msra.mxu0 0.0
    %126 = vmatprep.mubr.f32.mxu0 0.0
    %127 = vmatmul.mubr.f32.gmra.mxu0 %v60
    %v128 = vpop.f32.mrf.mxu0
    %v129 = vadd.f32 %v57, %v128
    %v130 = vpop.f32.mrf.mxu0
    %131 = vdwg.mxu0
    %v132 = vmax.f32 %v129, 0.0
    %v133 = vld [vmem:[#allocation3 + $0x8] sm:$0xff]
    %v134 = vld [vmem:[#allocation3 + $0x10] sm:$0xff]
    %v135 = vld [vmem:[#allocation3 + $0x18] sm:$0xff]
    %v136 = vld [vmem:[#allocation3 + $0x20] sm:$0xff]
    %v137 = vld [vmem:[#allocation3 + $0x28] sm:$0xff]
    %v138 = vld [vmem:[#allocation3 + $0x30] sm:$0xff]
    %v139 = vld [vmem:[#allocation3 + $0x38] sm:$0xff]
    %v140 = vld [vmem:[#allocation3 + $0x40] sm:$0xff]
    %v141 = vld [vmem:[#allocation6 + $0x1] sm:$0x1]
    %v142 = vlaneseq
    %v143 = vshrl.u32 %v142, 7
    %v144 = vsub.s32 0, %v143
    %v145 = vrot.slane %v141, %v144
    %vm146 = vcmask 523264
    %v148 = vsel %vm146, %v132, 0
    %150 = vmatprep.subr.mxu0 0.0
    %151 = vmatpush1.msra.mxu0 0.0
    %152 = vmatprep.subr.mxu0 0.0
    %153 = vmatpush1.msra.mxu0 0.0
    %154 = vmatprep.subr.mxu0 0.0
    %155 = vmatpush1.msra.mxu0 0.0
    %156 = vmatprep.subr.mxu0 0.0
    %157 = vmatpush1.msra.mxu0 0.0
    %158 = vmatprep.subr.mxu0 0.0
    %159 = vmatpush1.msra.mxu0 0.0
    %160 = vmatprep.subr.mxu0 0.0
    %161 = vmatpush1.msra.mxu0 0.0
    %162 = vmatprep.subr.mxu0 0.0
    %163 = vmatpush1.msra.mxu0 0.0
    %164 = vmatprep.subr.mxu0 0.0
    %165 = vmatpush1.msra.mxu0 0.0
    %166 = vmatprep.subr.mxu0 0.0
    %167 = vmatpush1.msra.mxu0 %v140
    %168 = vmatprep.subr.mxu0 0.0
    %169 = vmatpush1.msra.mxu0 %v139
    %170 = vmatprep.subr.mxu0 0.0
    %171 = vmatpush1.msra.mxu0 %v138
    %172 = vmatprep.subr.mxu0 0.0
    %173 = vmatpush1.msra.mxu0 %v137
    %174 = vmatprep.subr.mxu0 0.0
    %175 = vmatpush1.msra.mxu0 %v136
    %176 = vmatprep.subr.mxu0 0.0
    %177 = vmatpush1.msra.mxu0 %v135
    %178 = vmatprep.subr.mxu0 0.0
    %179 = vmatpush1.msra.mxu0 %v134
    %180 = vmatprep.subr.mxu0 0.0
    %181 = vmatpush1.msra.mxu0 %v133
    %182 = vmatprep.subr.mxu0 0.0
    %183 = vmatpush2.msra.mxu0 0.0
    %184 = vmatprep.subr.mxu0 0.0
    %185 = vmatpush2.msra.mxu0 0.0
    %186 = vmatprep.subr.mxu0 0.0
    %187 = vmatpush2.msra.mxu0 0.0
    %188 = vmatprep.subr.mxu0 0.0
    %189 = vmatpush2.msra.mxu0 0.0
    %190 = vmatprep.subr.mxu0 0.0
    %191 = vmatpush2.msra.mxu0 0.0
    %192 = vmatprep.subr.mxu0 0.0
    %193 = vmatpush2.msra.mxu0 0.0
    %194 = vmatprep.subr.mxu0 0.0
    %195 = vmatpush2.msra.mxu0 0.0
    %196 = vmatprep.subr.mxu0 0.0
    %197 = vmatpush2.msra.mxu0 0.0
    %198 = vmatprep.subr.mxu0 0.0
    %199 = vmatpush2.msra.mxu0 0.0
    %200 = vmatprep.subr.mxu0 0.0
    %201 = vmatpush2.msra.mxu0 0.0
    %202 = vmatprep.subr.mxu0 0.0
    %203 = vmatpush2.msra.mxu0 0.0
    %204 = vmatprep.subr.mxu0 0.0
    %205 = vmatpush2.msra.mxu0 0.0
    %206 = vmatprep.subr.mxu0 0.0
    %207 = vmatpush2.msra.mxu0 0.0
    %208 = vmatprep.subr.mxu0 0.0
    %209 = vmatpush2.msra.mxu0 0.0
    %210 = vmatprep.subr.mxu0 0.0
    %211 = vmatpush2.msra.mxu0 0.0
    %212 = vmatprep.subr.mxu0 0.0
    %213 = vmatpush2.msra.mxu0 0.0
    %214 = vmatprep.mubr.f32.mxu0 0.0
    %215 = vmatmul.mubr.f32.gmra.mxu0 %v148
    %v216 = vpop.f32.mrf.mxu0
    %v217 = vadd.f32 %v145, %v216
    %v218 = vpop.f32.mrf.mxu0
    %219 = vdwg.mxu0
    %v220 = vmax.f32 %v217, 0.0
    %v221 = vld [vmem:[#allocation3 + $0x48] sm:$0xff]
    %v222 = vld [vmem:[#allocation3 + $0x50] sm:$0xff]
    %v223 = vld [vmem:[#allocation3 + $0x58] sm:$0xff]
    %v224 = vld [vmem:[#allocation3 + $0x60] sm:$0xff]
    %v225 = vld [vmem:[#allocation6 + $0x2] sm:$0x1]
    %v226 = vlaneseq
    %v227 = vshrl.u32 %v226, 7
    %v228 = vsub.s32 0, %v227
    %v229 = vrot.slane %v225, %v228
    %vm230 = vcmask 261120
    %v232 = vsel %vm230, %v220, 0
    %234 = vmatprep.subr.mxu0 0.0
    %235 = vmatpush1.msra.mxu0 0.0
    %236 = vmatprep.subr.mxu0 0.0
    %237 = vmatpush1.msra.mxu0 0.0
    %238 = vmatprep.subr.mxu0 0.0
    %239 = vmatpush1.msra.mxu0 0.0
    %240 = vmatprep.subr.mxu0 0.0
    %241 = vmatpush1.msra.mxu0 0.0
    %242 = vmatprep.subr.mxu0 0.0
    %243 = vmatpush1.msra.mxu0 0.0
    %244 = vmatprep.subr.mxu0 0.0
    %245 = vmatpush1.msra.mxu0 0.0
    %246 = vmatprep.subr.mxu0 0.0
    %247 = vmatpush1.msra.mxu0 0.0
    %248 = vmatprep.subr.mxu0 0.0
    %249 = vmatpush1.msra.mxu0 0.0
    %250 = vmatprep.subr.mxu0 0.0
    %251 = vmatpush1.msra.mxu0 0.0
    %252 = vmatprep.subr.mxu0 0.0
    %253 = vmatpush1.msra.mxu0 0.0
    %254 = vmatprep.subr.mxu0 0.0
    %255 = vmatpush1.msra.mxu0 0.0
    %256 = vmatprep.subr.mxu0 0.0
    %257 = vmatpush1.msra.mxu0 0.0
    %258 = vmatprep.subr.mxu0 0.0
    %259 = vmatpush1.msra.mxu0 %v224
    %260 = vmatprep.subr.mxu0 0.0
    %261 = vmatpush1.msra.mxu0 %v223
    %262 = vmatprep.subr.mxu0 0.0
    %263 = vmatpush1.msra.mxu0 %v222
    %264 = vmatprep.subr.mxu0 0.0
    %265 = vmatpush1.msra.mxu0 %v221
    %266 = vmatprep.subr.mxu0 0.0
    %267 = vmatpush2.msra.mxu0 0.0
    %268 = vmatprep.subr.mxu0 0.0
    %269 = vmatpush2.msra.mxu0 0.0
    %270 = vmatprep.subr.mxu0 0.0
    %271 = vmatpush2.msra.mxu0 0.0
    %272 = vmatprep.subr.mxu0 0.0
    %273 = vmatpush2.msra.mxu0 0.0
    %274 = vmatprep.subr.mxu0 0.0
    %275 = vmatpush2.msra.mxu0 0.0
    %276 = vmatprep.subr.mxu0 0.0
    %277 = vmatpush2.msra.mxu0 0.0
    %278 = vmatprep.subr.mxu0 0.0
    %279 = vmatpush2.msra.mxu0 0.0
    %280 = vmatprep.subr.mxu0 0.0
    %281 = vmatpush2.msra.mxu0 0.0
    %282 = vmatprep.subr.mxu0 0.0
    %283 = vmatpush2.msra.mxu0 0.0
    %284 = vmatprep.subr.mxu0 0.0
    %285 = vmatpush2.msra.mxu0 0.0
    %286 = vmatprep.subr.mxu0 0.0
    %287 = vmatpush2.msra.mxu0 0.0
    %288 = vmatprep.subr.mxu0 0.0
    %289 = vmatpush2.msra.mxu0 0.0
    %290 = vmatprep.subr.mxu0 0.0
    %291 = vmatpush2.msra.mxu0 0.0
    %292 = vmatprep.subr.mxu0 0.0
    %293 = vmatpush2.msra.mxu0 0.0
    %294 = vmatprep.subr.mxu0 0.0
    %295 = vmatpush2.msra.mxu0 0.0
    %296 = vmatprep.subr.mxu0 0.0
    %297 = vmatpush2.msra.mxu0 0.0
    %298 = vmatprep.mubr.f32.mxu0 0.0
    %299 = vmatmul.mubr.f32.gmra.mxu0 %v232
    %v300 = vpop.f32.mrf.mxu0
    %v301 = vadd.f32 %v229, %v300
    %v302 = vpop.f32.mrf.mxu0
    %303 = vdwg.mxu0
    %v304 = vmax.f32 %v301, 0.0
    %v305 = vld [vmem:[#allocation3 + $0x68] sm:$0xff]
    %v306 = vld [vmem:[#allocation3 + $0x70] sm:$0xff]
    %v307 = vld [vmem:[#allocation6 + $0x3] sm:$0x1]
    %v308 = vlaneseq
    %v309 = vshrl.u32 %v308, 7
    %v310 = vsub.s32 0, %v309
    %v311 = vrot.slane %v307, %v310
    %vm312 = vcmask 130048
    %v314 = vsel %vm312, %v304, 0
    %316 = vmatprep.subr.mxu0 0.0
    %317 = vmatpush1.msra.mxu0 0.0
    %318 = vmatprep.subr.mxu0 0.0
    %319 = vmatpush1.msra.mxu0 0.0
    %320 = vmatprep.subr.mxu0 0.0
    %321 = vmatpush1.msra.mxu0 0.0
    %322 = vmatprep.subr.mxu0 0.0
    %323 = vmatpush1.msra.mxu0 0.0
    %324 = vmatprep.subr.mxu0 0.0
    %325 = vmatpush1.msra.mxu0 0.0
    %326 = vmatprep.subr.mxu0 0.0
    %327 = vmatpush1.msra.mxu0 0.0
    %328 = vmatprep.subr.mxu0 0.0
    %329 = vmatpush1.msra.mxu0 0.0
    %330 = vmatprep.subr.mxu0 0.0
    %331 = vmatpush1.msra.mxu0 0.0
    %332 = vmatprep.subr.mxu0 0.0
    %333 = vmatpush1.msra.mxu0 0.0
    %334 = vmatprep.subr.mxu0 0.0
    %335 = vmatpush1.msra.mxu0 0.0
    %336 = vmatprep.subr.mxu0 0.0
    %337 = vmatpush1.msra.mxu0 0.0
    %338 = vmatprep.subr.mxu0 0.0
    %339 = vmatpush1.msra.mxu0 0.0
    %340 = vmatprep.subr.mxu0 0.0
    %341 = vmatpush1.msra.mxu0 0.0
    %342 = vmatprep.subr.mxu0 0.0
    %343 = vmatpush1.msra.mxu0 0.0
    %344 = vmatprep.subr.mxu0 0.0
    %345 = vmatpush1.msra.mxu0 %v306
    %346 = vmatprep.subr.mxu0 0.0
    %347 = vmatpush1.msra.mxu0 %v305
    %348 = vmatprep.subr.mxu0 0.0
    %349 = vmatpush2.msra.mxu0 0.0
    %350 = vmatprep.subr.mxu0 0.0
    %351 = vmatpush2.msra.mxu0 0.0
    %352 = vmatprep.subr.mxu0 0.0
    %353 = vmatpush2.msra.mxu0 0.0
    %354 = vmatprep.subr.mxu0 0.0
    %355 = vmatpush2.msra.mxu0 0.0
    %356 = vmatprep.subr.mxu0 0.0
    %357 = vmatpush2.msra.mxu0 0.0
    %358 = vmatprep.subr.mxu0 0.0
    %359 = vmatpush2.msra.mxu0 0.0
    %360 = vmatprep.subr.mxu0 0.0
    %361 = vmatpush2.msra.mxu0 0.0
    %362 = vmatprep.subr.mxu0 0.0
    %363 = vmatpush2.msra.mxu0 0.0
    %364 = vmatprep.subr.mxu0 0.0
    %365 = vmatpush2.msra.mxu0 0.0
    %366 = vmatprep.subr.mxu0 0.0
    %367 = vmatpush2.msra.mxu0 0.0
    %368 = vmatprep.subr.mxu0 0.0
    %369 = vmatpush2.msra.mxu0 0.0
    %370 = vmatprep.subr.mxu0 0.0
    %371 = vmatpush2.msra.mxu0 0.0
    %372 = vmatprep.subr.mxu0 0.0
    %373 = vmatpush2.msra.mxu0 0.0
    %374 = vmatprep.subr.mxu0 0.0
    %375 = vmatpush2.msra.mxu0 0.0
    %376 = vmatprep.subr.mxu0 0.0
    %377 = vmatpush2.msra.mxu0 0.0
    %378 = vmatprep.subr.mxu0 0.0
    %379 = vmatpush2.msra.mxu0 0.0
    %380 = vmatprep.mubr.f32.mxu0 0.0
    %381 = vmatmul.mubr.f32.gmra.mxu0 %v314
    %v382 = vpop.f32.mrf.mxu0
    %v383 = vadd.f32 %v311, %v382
    %v384 = vpop.f32.mrf.mxu0
    %385 = vdwg.mxu0
    %386 = vst [vmem:[#allocation8] sm:$0xff] %v383
    %vm387 = vcmask 0
    %388 = vst.msk [vmem:[#allocation9] sm:$0x1] %vm387, 0.0
    %s389 = sld [smem:[#allocation2]]
    %p390 = scmp.gt.s32.totalorder %s389, 0
    // Predicated region
    $region30: #{tpu_custom_call.1} parent=1 // pred_check
      %p391 = pneg %p390
    $region31: #{tpu_custom_call.1} parent=1 // pred_check_branch
      %393 = sbr.rel (%p391) target = $region33
    $region32: #{tpu_custom_call.1} parent=1 // pred_region
      %vm394 = vcmask 162816
      %v395 = vsel %vm394, %v383, -inf
      %396 = vmax.xlane.f32.xlu0 %v395
      %v397 = vpop.xlane.xlu0 %396
      %v398 = vsub.f32 %v383, %v397
      %v399 = vmul.f32 %v398, 1.442695
      %v400 = vpow.pop %v399
      %v401 = vsel %vm394, %v400, 0.0
      %402 = vadd.xlane.f32.xlu0 %v401
      %v403 = vpop.xlane.xlu0 %402
      %v404 = vlog2.pop %v403
      %v405 = vmul.f32 %v404, 0.6931472
      %v406 = vadd.f32 %v405, %v397
      %v407 = vlaneseq
      %v408 = vand.u32 %v407, 127
      %v409 = vld [vmem:[%s3] sm:$0xff]
      %410 = vset.pattern.permute.xlu0 0
      %411 = vperm.xlu0 %410, %v409
      %v412 = vpop.permute.xlu0 %411
      %vm413 = vcmp.eq.s32.totalorder %v408, %v412
      %v414 = vsel %vm413, %v383, 0.0
      %v415 = vsel %vm394, %v414, 0.0
      %416 = vadd.xlane.f32.xlu0 %v415
      %v417 = vpop.xlane.xlu0 %416
      %v418 = vsub.f32 %v406, %v417
      %vm419 = vcmask 7168
      %v420 = vsel %vm419, %v418, 0.0
      %421 = vadd.xlane.f32.xlu0 %v420
      %v422 = vpop.xlane.xlu0 %421
      %v423 = vrot.slane %v422, 4
      %v424 = vadd.f32 %v422, %v423
      %v425 = vrot.slane %v424, 2
      %v426 = vadd.f32 %v424, %v425
      %v427 = vrot.slane %v426, 1
      %v428 = vadd.f32 %v426, %v427
      %s429 = vtos %v428
      %s430 = smul.f32 %s429, 0.125
      %v431 = vstv %s430
      %432 = vst.msk [vmem:[#allocation9] sm:$0x1] %vm387, %v431
    $region33: #{tpu_custom_call.1} parent=1 // pred_fallthru
      _
    // Predicated region
    $region34: #{tpu_custom_call.1} parent=1 // pred_check
      _
    $region35: #{tpu_custom_call.1} parent=1 // pred_check_branch
      %434 = sbr.rel (0) target = $region37
    $region36: #{tpu_custom_call.1} parent=1 // pred_region
      %s436 = ssub.s32 128, 128
      %437 = vsyncadd [#allocation5], %s436
      %s439 = sshll.u32 [#allocation8], 4
      %s440 = int_to_ptr.vmem [resolvable:$true] %s439
      %442 = dma.vmem_to_hbm [thread:$0]  %s440, 128, %s5, [#allocation5]
    $region37: #{tpu_custom_call.1} parent=1 // pred_fallthru
      _
    // Predicated region
    $region38: #{tpu_custom_call.1} parent=1 // pred_check
      _
    $region39: #{tpu_custom_call.1} parent=1 // pred_check_branch
      %444 = sbr.rel (0) target = $region41
    $region40: #{tpu_custom_call.1} parent=1 // pred_region
      %s446 = ssub.s32 16, 16
      %447 = vsyncadd [#allocation10], %s446
      %s449 = sshll.u32 [#allocation9], 4
      %s450 = int_to_ptr.vmem [resolvable:$true] %s449
      %452 = dma.vmem_to_hbm [thread:$0]  %s450, 16, %s6, [#allocation10]
    $region41: #{tpu_custom_call.1} parent=1 // pred_fallthru
      _
    // Predicated region
    $region42: #{tpu_custom_call.1} parent=1 // pred_check
      _
    $region43: #{tpu_custom_call.1} parent=1 // pred_check_branch
      %454 = sbr.rel (0) target = $region45
    $region44: #{tpu_custom_call.1} parent=1 // pred_region
      %455 = dma.done [#allocation5], 128
    $region45: #{tpu_custom_call.1} parent=1 // pred_fallthru
      _
    // Predicated region
    $region46: #{tpu_custom_call.1} parent=1 // pred_check
      _
    $region47: #{tpu_custom_call.1} parent=1 // pred_check_branch
      %457 = sbr.rel (0) target = $region49
    $region48: #{tpu_custom_call.1} parent=1 // pred_region
      %458 = dma.done [#allocation10], 16
    $region49: #{tpu_custom_call.1} parent=1 // pred_fallthru
      _
    %459 = vsyncpa [#allocation4], 1
    %460 = vsyncpa [#allocation7], 1
    %461 = vsyncpa [#allocation5], 1
    %462 = vsyncpa [#allocation10], 1

</llo_original>
